<compile_context>
chip_gen: v7x
topology: tpu7x:2x2x1
jax: 0.10.0
libtpu: 0.0.40
codegen_flags: <defaults>
</compile_context>

<pallas_src>
import jax
import jax.numpy as jnp
from jax.experimental import pallas as pl
from jax.experimental.pallas import tpu as pltpu


def _round_up(n, m):
    return ((n + m - 1) // m) * m


def munet_kernel(x_ref, w1_ref, b1_ref, w2_ref, b2_ref, w3_ref, b3_ref, mu_ref):
    # One batch tile per grid step; weights/biases are VMEM-resident.
    x = x_ref[...].astype(jnp.bfloat16)                                  # (TB, 24)

    h1 = jnp.dot(x, w1_ref[...],
                 preferred_element_type=jnp.float32) + b1_ref[...]       # (TB, 128) f32
    h1 = jnp.maximum(h1, 0.0)                                            # ReLU

    h2 = jnp.dot(h1.astype(jnp.bfloat16), w2_ref[...],
                 preferred_element_type=jnp.float32) + b2_ref[...]       # (TB, 64) f32
    h2 = jnp.maximum(h2, 0.0)                                            # ReLU

    mu = jnp.dot(h2.astype(jnp.bfloat16), w3_ref[...],
                 preferred_element_type=jnp.float32) + b3_ref[...]       # (TB, 4) f32
    mu_ref[...] = jnp.tanh(mu).astype(mu_ref.dtype)


def munet_forward(x, params, *, tb=4096):
    """x: (B, 24) f32 -> (B, 4) f32."""
    w1, b1, w2, b2, w3, b3 = params
    B = x.shape[0]

    # Batch tile: multiple of 8 (sublane constraint), no larger than needed.
    tb = _round_up(min(tb, _round_up(max(B, 8), 8)), 8)
    B_pad = _round_up(B, tb)
    if B_pad != B:
        x = jnp.pad(x, ((0, B_pad - B), (0, 0)))

    # MXU operands in bf16 (cast once, outside the kernel); biases stay f32.
    w1b, w2b, w3b = (w.astype(jnp.bfloat16) for w in (w1, w2, w3))

    # Constant index_map -> block index never changes -> no re-DMA per step.
    resident = lambda a: pl.BlockSpec(a.shape, lambda i: (0,) * a.ndim)

    out = pl.pallas_call(
        munet_kernel,
        out_shape=jax.ShapeDtypeStruct((B_pad, 4), jnp.float32),
        grid=(B_pad // tb,),
        in_specs=[
            pl.BlockSpec((tb, 24), lambda i: (i, 0)),   # streamed batch tile
            resident(w1b), resident(b1),
            resident(w2b), resident(b2),
            resident(w3b), resident(b3),
        ],
        out_specs=pl.BlockSpec((tb, 4), lambda i: (i, 0)),
        compiler_params=pltpu.CompilerParams(
            dimension_semantics=("parallel",),          # megacore on v7x
            vmem_limit_bytes=32 * 1024 * 1024,          # headroom (v5e default 16 MiB)
        ),
    )(x, w1b, b1, w2b, b2, w3b, b3)
    return out[:B]


def init_params(key):
    """Deterministic init mimicking PyTorch nn.Linear default (uniform +/- 1/sqrt(fan_in))."""
    def linear(key, fan_in, fan_out):
        kw, kb = jax.random.split(key)
        bound = 1.0 / jnp.sqrt(fan_in)
        # Stored transposed relative to PyTorch: (in, out) so forward is x @ W.
        w = jax.random.uniform(kw, (fan_in, fan_out), jnp.float32, -bound, bound)
        b = jax.random.uniform(kb, (1, fan_out), jnp.float32, -bound, bound)
        return w, b

    k1, k2, k3 = jax.random.split(key, 3)
    w1, b1 = linear(k1, 24, 128)
    w2, b2 = linear(k2, 128, 64)
    w3, b3 = linear(k3, 64, 4)
    return (w1, b1, w2, b2, w3, b3)


def munet_reference_f32(x, params):
    """Pure-JAX f32 reference (matches the PyTorch module exactly)."""
    w1, b1, w2, b2, w3, b3 = params
    h1 = jnp.maximum(x @ w1 + b1, 0.0)
    h2 = jnp.maximum(h1 @ w2 + b2, 0.0)
    return jnp.tanh(h2 @ w3 + b3)


def munet_reference_bf16(x, params):
    """Pure-JAX reference with the same bf16-operand / f32-accumulate recipe as the kernel."""
    w1, b1, w2, b2, w3, b3 = params
    bf = jnp.bfloat16
    h1 = jnp.maximum(
        jnp.dot(x.astype(bf), w1.astype(bf), preferred_element_type=jnp.float32) + b1, 0.0)
    h2 = jnp.maximum(
        jnp.dot(h1.astype(bf), w2.astype(bf), preferred_element_type=jnp.float32) + b2, 0.0)
    mu = jnp.dot(h2.astype(bf), w3.astype(bf), preferred_element_type=jnp.float32) + b3
    return jnp.tanh(mu)


if __name__ == "__main__":
    key = jax.random.PRNGKey(0)
    k_params, k_x1, k_x2 = jax.random.split(key, 3)
    params = init_params(k_params)

    # Small demo batch (single grid step). Note: at sizes this small the run is
    # pure pallas_call/DMA fixed overhead; benchmark at realistic batches.
    B = 64
    x = jax.random.normal(k_x1, (B, 24), jnp.float32)
    mu = jax.block_until_ready(munet_forward(x, params))
    assert mu.shape == (B, 4), mu.shape
    assert jnp.allclose(mu, munet_reference_bf16(x, params), atol=1e-3, rtol=1e-3), \
        "mismatch vs matched-precision reference"
    assert jnp.allclose(mu, munet_reference_f32(x, params), atol=5e-2, rtol=5e-2), \
        "mismatch vs f32 reference"

    # Ragged batch with a small tile: exercises padding, multi-step grid, and
    # resident-weight reuse across grid steps.
    B2 = 50
    x2 = jax.random.normal(k_x2, (B2, 24), jnp.float32)
    mu2 = jax.block_until_ready(munet_forward(x2, params, tb=16))
    assert mu2.shape == (B2, 4), mu2.shape
    assert jnp.allclose(mu2, munet_reference_bf16(x2, params), atol=1e-3, rtol=1e-3), \
        "mismatch vs matched-precision reference (ragged batch)"

    print("KERNEL_OK")
</pallas_src>

<mosaic_0001>
module attributes {stable_mosaic.version = 11 : i64} {
  func.func @munet_kernel(%arg0: i32, %arg1: memref<64x24xf32, #tpu.memory_space<vmem>>, %arg2: memref<24x128xbf16, #tpu.memory_space<vmem>>, %arg3: memref<1x128xf32, #tpu.memory_space<vmem>>, %arg4: memref<128x64xbf16, #tpu.memory_space<vmem>>, %arg5: memref<1x64xf32, #tpu.memory_space<vmem>>, %arg6: memref<64x4xbf16, #tpu.memory_space<vmem>>, %arg7: memref<1x4xf32, #tpu.memory_space<vmem>>, %arg8: memref<64x4xf32, #tpu.memory_space<vmem>>) attributes {dimension_semantics = [#tpu.dimension_semantics<parallel>], iteration_bounds = array<i64: 1>, scalar_prefetch = 0 : i64, scratch_operands = 0 : i64, tpu.core_type = #tpu.core_type<tc>, window_params = [{transform_indices = @transform_0, window_bounds = array<i64: 64, 24>}, {pipeline_mode = #tpu.pipeline_mode<synchronous>, transform_indices = @transform_1, window_bounds = array<i64: 24, 128>}, {pipeline_mode = #tpu.pipeline_mode<synchronous>, transform_indices = @transform_2, window_bounds = array<i64: 1, 128>}, {pipeline_mode = #tpu.pipeline_mode<synchronous>, transform_indices = @transform_3, window_bounds = array<i64: 128, 64>}, {pipeline_mode = #tpu.pipeline_mode<synchronous>, transform_indices = @transform_4, window_bounds = array<i64: 1, 64>}, {pipeline_mode = #tpu.pipeline_mode<synchronous>, transform_indices = @transform_5, window_bounds = array<i64: 64, 4>}, {pipeline_mode = #tpu.pipeline_mode<synchronous>, transform_indices = @transform_6, window_bounds = array<i64: 1, 4>}, {transform_indices = @transform_7, window_bounds = array<i64: 64, 4>}]} {
    %c0 = arith.constant 0 : index
    %c0_0 = arith.constant 0 : index
    %0 = vector.load %arg1[%c0, %c0_0] : memref<64x24xf32, #tpu.memory_space<vmem>>, vector<64x24xf32>
    %1 = arith.truncf %0 : vector<64x24xf32> to vector<64x24xbf16>
    %c0_1 = arith.constant 0 : index
    %c0_2 = arith.constant 0 : index
    %2 = vector.load %arg2[%c0_1, %c0_2] : memref<24x128xbf16, #tpu.memory_space<vmem>>, vector<24x128xbf16>
    %cst = arith.constant dense<0.000000e+00> : vector<64x128xf32>
    %3 = tpu.matmul %1, %2, %cst {dimension_numbers = #tpu.dot_dimension_numbers<[1], [0], [0], [1], [0, 0, 1, 1], [], []>} : vector<64x24xbf16>, vector<24x128xbf16>, vector<64x128xf32> -> vector<64x128xf32>
    %c0_3 = arith.constant 0 : index
    %c0_4 = arith.constant 0 : index
    %4 = vector.load %arg3[%c0_3, %c0_4] : memref<1x128xf32, #tpu.memory_space<vmem>>, vector<1x128xf32>
    %5 = vector.broadcast %4 : vector<1x128xf32> to vector<64x128xf32>
    %6 = arith.addf %3, %5 : vector<64x128xf32>
    %cst_5 = arith.constant 0.000000e+00 : f32
    %7 = vector.broadcast %cst_5 : f32 to vector<64x128xf32>
    %8 = arith.maximumf %6, %7 : vector<64x128xf32>
    %9 = arith.truncf %8 : vector<64x128xf32> to vector<64x128xbf16>
    %c0_6 = arith.constant 0 : index
    %c0_7 = arith.constant 0 : index
    %10 = vector.load %arg4[%c0_6, %c0_7] : memref<128x64xbf16, #tpu.memory_space<vmem>>, vector<128x64xbf16>
    %cst_8 = arith.constant dense<0.000000e+00> : vector<64x64xf32>
    %11 = tpu.matmul %9, %10, %cst_8 {dimension_numbers = #tpu.dot_dimension_numbers<[1], [0], [0], [1], [0, 0, 1, 1], [], []>} : vector<64x128xbf16>, vector<128x64xbf16>, vector<64x64xf32> -> vector<64x64xf32>
    %c0_9 = arith.constant 0 : index
    %c0_10 = arith.constant 0 : index
    %12 = vector.load %arg5[%c0_9, %c0_10] : memref<1x64xf32, #tpu.memory_space<vmem>>, vector<1x64xf32>
    %13 = vector.broadcast %12 : vector<1x64xf32> to vector<64x64xf32>
    %14 = arith.addf %11, %13 : vector<64x64xf32>
    %cst_11 = arith.constant 0.000000e+00 : f32
    %15 = vector.broadcast %cst_11 : f32 to vector<64x64xf32>
    %16 = arith.maximumf %14, %15 : vector<64x64xf32>
    %17 = arith.truncf %16 : vector<64x64xf32> to vector<64x64xbf16>
    %c0_12 = arith.constant 0 : index
    %c0_13 = arith.constant 0 : index
    %18 = vector.load %arg6[%c0_12, %c0_13] : memref<64x4xbf16, #tpu.memory_space<vmem>>, vector<64x4xbf16>
    %cst_14 = arith.constant dense<0.000000e+00> : vector<64x4xf32>
    %19 = tpu.matmul %17, %18, %cst_14 {dimension_numbers = #tpu.dot_dimension_numbers<[1], [0], [0], [1], [0, 0, 1, 1], [], []>} : vector<64x64xbf16>, vector<64x4xbf16>, vector<64x4xf32> -> vector<64x4xf32>
    %c0_15 = arith.constant 0 : index
    %c0_16 = arith.constant 0 : index
    %20 = vector.load %arg7[%c0_15, %c0_16] : memref<1x4xf32, #tpu.memory_space<vmem>>, vector<1x4xf32>
    %21 = vector.broadcast %20 : vector<1x4xf32> to vector<64x4xf32>
    %22 = arith.addf %19, %21 : vector<64x4xf32>
    %23 = math.tanh %22 : vector<64x4xf32>
    %c0_17 = arith.constant 0 : index
    %c0_18 = arith.constant 0 : index
    %24 = vector.load %arg8[%c0_17, %c0_18] : memref<64x4xf32, #tpu.memory_space<vmem>>, vector<64x4xf32>
    tpu.vector_store %arg8[%c0_17, %c0_18], %23 {strides = array<i32>} : memref<64x4xf32, #tpu.memory_space<vmem>>, vector<64x4xf32>,
    return
  }
  func.func @transform_0(%arg0: i32) -> (i32, i32) {
    %c0_i32 = arith.constant 0 : i32
    %c0_i32_0 = arith.constant 0 : i32
    return %arg0, %c0_i32 : i32, i32
  }
  func.func @transform_1(%arg0: i32) -> (i32, i32) {
    %c0_i32 = arith.constant 0 : i32
    %c0_i32_0 = arith.constant 0 : i32
    %c0_i32_1 = arith.constant 0 : i32
    return %c0_i32, %c0_i32_0 : i32, i32
  }
  func.func @transform_2(%arg0: i32) -> (i32, i32) {
    %c0_i32 = arith.constant 0 : i32
    %c0_i32_0 = arith.constant 0 : i32
    %c0_i32_1 = arith.constant 0 : i32
    return %c0_i32, %c0_i32_0 : i32, i32
  }
  func.func @transform_3(%arg0: i32) -> (i32, i32) {
    %c0_i32 = arith.constant 0 : i32
    %c0_i32_0 = arith.constant 0 : i32
    %c0_i32_1 = arith.constant 0 : i32
    return %c0_i32, %c0_i32_0 : i32, i32
  }
  func.func @transform_4(%arg0: i32) -> (i32, i32) {
    %c0_i32 = arith.constant 0 : i32
    %c0_i32_0 = arith.constant 0 : i32
    %c0_i32_1 = arith.constant 0 : i32
    return %c0_i32, %c0_i32_0 : i32, i32
  }
  func.func @transform_5(%arg0: i32) -> (i32, i32) {
    %c0_i32 = arith.constant 0 : i32
    %c0_i32_0 = arith.constant 0 : i32
    %c0_i32_1 = arith.constant 0 : i32
    return %c0_i32, %c0_i32_0 : i32, i32
  }
  func.func @transform_6(%arg0: i32) -> (i32, i32) {
    %c0_i32 = arith.constant 0 : i32
    %c0_i32_0 = arith.constant 0 : i32
    %c0_i32_1 = arith.constant 0 : i32
    return %c0_i32, %c0_i32_0 : i32, i32
  }
  func.func @transform_7(%arg0: i32) -> (i32, i32) {
    %c0_i32 = arith.constant 0 : i32
    %c0_i32_0 = arith.constant 0 : i32
    return %arg0, %c0_i32 : i32, i32
  }
}

</mosaic_0001>

<llo_original>
// kernel: tpu_custom_call.1
$region0: #{tpu_custom_call.1}
  #allocation0 [shape = 'u32[]', space=smem, size = 0x4, offset = 0x4, fixed_abs, tag = 'smem constant byte address 0x4 - core index']
  #allocation1 [shape = 'u32[144,128]{1,0:T(1,128)}', space=vmem, size = 0x12000, scoped, tag = 'internal scratch']
  %s0 = inlined_call_operand.vmem [shape: f32[64,24], index: 0, kind: input, shape index: {}]
  %s1 = inlined_call_operand.vmem [shape: bf16[24,128], index: 1, kind: input, shape index: {}]
  %s2 = inlined_call_operand.vmem [shape: f32[1,128], index: 2, kind: input, shape index: {}]
  %s3 = inlined_call_operand.vmem [shape: bf16[128,64], index: 3, kind: input, shape index: {}]
  %s4 = inlined_call_operand.vmem [shape: f32[1,64], index: 4, kind: input, shape index: {}]
  %s5 = inlined_call_operand.vmem [shape: bf16[64,4], index: 5, kind: input, shape index: {}]
  %s6 = inlined_call_operand.vmem [shape: f32[1,4], index: 6, kind: input, shape index: {}]
  %s7 = inlined_call_operand.vmem [shape: f32[64,4], index: 7, kind: output, shape index: {}]
  %s8 = sld [smem:[#allocation0]]
  $region38: #{tpu_custom_call.1} parent=0
    _
  %s10 = ssub.s32 1, %s8
  %s11 = scalar_select 0, %s10, %s8
  // Predicated region
  $region2: #{tpu_custom_call.1} parent=0 // pred_check
    _
  $region3: #{tpu_custom_call.1} parent=0 // pred_check_branch
    %13 = sbr.rel (0) target = $region5
  $region4: #{tpu_custom_call.1} parent=0 // pred_region
    _
  $region5: #{tpu_custom_call.1} parent=0 // pred_fallthru
    _
  // Predicated region
  $region6: #{tpu_custom_call.1} parent=0 // pred_check
    _
  $region7: #{tpu_custom_call.1} parent=0 // pred_check_branch
    %15 = sbr.rel (0) target = $region9
  $region8: #{tpu_custom_call.1} parent=0 // pred_region
    _
  $region9: #{tpu_custom_call.1} parent=0 // pred_fallthru
    _
  // Predicated region
  $region10: #{tpu_custom_call.1} parent=0 // pred_check
    _
  $region11: #{tpu_custom_call.1} parent=0 // pred_check_branch
    %17 = sbr.rel (0) target = $region13
  $region12: #{tpu_custom_call.1} parent=0 // pred_region
    _
  $region13: #{tpu_custom_call.1} parent=0 // pred_fallthru
    _
  // Predicated region
  $region14: #{tpu_custom_call.1} parent=0 // pred_check
    _
  $region15: #{tpu_custom_call.1} parent=0 // pred_check_branch
    %19 = sbr.rel (0) target = $region17
  $region16: #{tpu_custom_call.1} parent=0 // pred_region
    _
  $region17: #{tpu_custom_call.1} parent=0 // pred_fallthru
    _
  // Predicated region
  $region18: #{tpu_custom_call.1} parent=0 // pred_check
    _
  $region19: #{tpu_custom_call.1} parent=0 // pred_check_branch
    %21 = sbr.rel (0) target = $region21
  $region20: #{tpu_custom_call.1} parent=0 // pred_region
    _
  $region21: #{tpu_custom_call.1} parent=0 // pred_fallthru
    _
  // Predicated region
  $region22: #{tpu_custom_call.1} parent=0 // pred_check
    _
  $region23: #{tpu_custom_call.1} parent=0 // pred_check_branch
    %23 = sbr.rel (0) target = $region25
  $region24: #{tpu_custom_call.1} parent=0 // pred_region
    _
  $region25: #{tpu_custom_call.1} parent=0 // pred_fallthru
    _
  // Predicated region
  $region26: #{tpu_custom_call.1} parent=0 // pred_check
    _
  $region27: #{tpu_custom_call.1} parent=0 // pred_check_branch
    %25 = sbr.rel (0) target = $region29
  $region28: #{tpu_custom_call.1} parent=0 // pred_region
    _
  $region29: #{tpu_custom_call.1} parent=0 // pred_fallthru
    _
  %v27 = vld [vmem:[%s0] sm:$0xff]
  %v28 = vld [vmem:[%s0 + $0x8] sm:$0xff]
  %v29 = vld [vmem:[%s0 + $0x10] sm:$0xff]
  %v30 = vld [vmem:[%s0 + $0x18] sm:$0xff]
  %v31 = vld [vmem:[%s0 + $0x20] sm:$0xff]
  %v32 = vld [vmem:[%s0 + $0x28] sm:$0xff]
  %v33 = vld [vmem:[%s0 + $0x30] sm:$0xff]
  %v34 = vld [vmem:[%s0 + $0x38] sm:$0xff]
  %v35 = vpack.c.bf16 %v28, %v27
  %v36 = vpack.c.bf16 %v30, %v29
  %v37 = vpack.c.bf16 %v32, %v31
  %v38 = vpack.c.bf16 %v34, %v33
  %v39 = vld [vmem:[%s1] sm:$0xf]
  %v40 = vld [vmem:[%s1 + $0x4] sm:$0xf]
  %v41 = vld [vmem:[%s1 + $0x8] sm:$0xf]
  %v42 = vld [vmem:[%s2] sm:$0x1]
  %v44 = vlaneseq
  %v45 = vshrl.u32 %v44, 7
  %v46 = vsub.s32 0, %v45
  %v47 = vrot.slane %v42, %v46
  %v52 = vunpack.c.l.b16 %v39
  %v53 = vunpack.c.l.b16 %v40
  %v54 = vunpack.c.l.b16 %v41
  %v55 = vpack.c.b16 %v53, %v52
  %v56 = vpack.c.b16 %v54, %v54
  %vm58 = vcmask 195584
  %v60 = vsel %vm58, %v35, 0
  %v63 = vsel %vm58, %v36, 0
  %v66 = vsel %vm58, %v37, 0
  %v69 = vsel %vm58, %v38, 0
  %vm71 = vcmask 1043456
  %v73 = vsel %vm71, %v56, 0
  %75 = vmatprep.subr.bf16.mxu0 0
  %76 = vmatpush1.bf16.msra.mxu0 %v55
  %77 = vmatprep.subr.bf16.mxu0 0
  %78 = vmatpush1.bf16.msra.mxu0 %v73
  %79 = vmatprep.subr.bf16.mxu0 0
  %80 = vmatpush1.bf16.msra.mxu0 0
  %81 = vmatprep.subr.bf16.mxu0 0
  %82 = vmatpush1.bf16.msra.mxu0 0
  %83 = vmatprep.subr.bf16.mxu0 0
  %84 = vmatpush1.bf16.msra.mxu0 0
  %85 = vmatprep.subr.bf16.mxu0 0
  %86 = vmatpush1.bf16.msra.mxu0 0
  %87 = vmatprep.subr.bf16.mxu0 0
  %88 = vmatpush1.bf16.msra.mxu0 0
  %89 = vmatprep.subr.bf16.mxu0 0
  %90 = vmatpush1.bf16.msra.mxu0 0
  %91 = vmatprep.subr.bf16.mxu0 0
  %92 = vmatpush1.bf16.msra.mxu0 0
  %93 = vmatprep.subr.bf16.mxu0 0
  %94 = vmatpush1.bf16.msra.mxu0 0
  %95 = vmatprep.subr.bf16.mxu0 0
  %96 = vmatpush1.bf16.msra.mxu0 0
  %97 = vmatprep.subr.bf16.mxu0 0
  %98 = vmatpush1.bf16.msra.mxu0 0
  %99 = vmatprep.subr.bf16.mxu0 0
  %100 = vmatpush1.bf16.msra.mxu0 0
  %101 = vmatprep.subr.bf16.mxu0 0
  %102 = vmatpush1.bf16.msra.mxu0 0
  %103 = vmatprep.subr.bf16.mxu0 0
  %104 = vmatpush1.bf16.msra.mxu0 0
  %105 = vmatprep.subr.bf16.mxu0 0
  %106 = vmatpush1.bf16.msra.mxu0 0
  %107 = vmatprep.mubr.bf16.mxu0 0
  %108 = vmatmul.mubr.bf16.gmra.mrb[0].mxu0 %v60
  %v109 = vpop.f32.mrb[0].mxu0
  %v110 = vadd.f32 %v47, %v109
  %v111 = vpop.f32.mrb[0].mxu0
  %v112 = vpop.f32.mrb[0].mxu0
  %v113 = vadd.f32 %v47, %v112
  %v114 = vpop.f32.mrb[0].mxu0
  %115 = vmatprep.mubr.bf16.mxu0 0
  %116 = vmatmul.mubr.bf16.gmra.mrb[0].mxu0 %v63
  %v117 = vpop.f32.mrb[0].mxu0
  %v118 = vadd.f32 %v47, %v117
  %v119 = vpop.f32.mrb[0].mxu0
  %v120 = vpop.f32.mrb[0].mxu0
  %v121 = vadd.f32 %v47, %v120
  %v122 = vpop.f32.mrb[0].mxu0
  %123 = vmatprep.mubr.bf16.mxu0 0
  %124 = vmatmul.mubr.bf16.gmra.mrb[0].mxu0 %v66
  %v125 = vpop.f32.mrb[0].mxu0
  %v126 = vadd.f32 %v47, %v125
  %v127 = vpop.f32.mrb[0].mxu0
  %v128 = vpop.f32.mrb[0].mxu0
  %v129 = vadd.f32 %v47, %v128
  %v130 = vpop.f32.mrb[0].mxu0
  %131 = vmatprep.mubr.bf16.mxu0 0
  %132 = vmatmul.mubr.bf16.gmra.mrb[0].mxu0 %v69
  %v133 = vpop.f32.mrb[0].mxu0
  %v134 = vadd.f32 %v47, %v133
  %v135 = vpop.f32.mrb[0].mxu0
  %v136 = vpop.f32.mrb[0].mxu0
  %v137 = vadd.f32 %v47, %v136
  %v138 = vpop.f32.mrb[0].mxu0
  %139 = vdwg.mxu0
  %v140 = vmax.f32 %v110, 0.0
  %v141 = vmax.f32 %v113, 0.0
  %v142 = vmax.f32 %v118, 0.0
  %v143 = vmax.f32 %v121, 0.0
  %v144 = vmax.f32 %v126, 0.0
  %v145 = vmax.f32 %v129, 0.0
  %v146 = vmax.f32 %v134, 0.0
  %v147 = vmax.f32 %v137, 0.0
  %v148 = vpack.c.bf16 %v141, %v140
  %v149 = vpack.c.bf16 %v143, %v142
  %v150 = vpack.c.bf16 %v145, %v144
  %v151 = vpack.c.bf16 %v147, %v146
  %v152 = vld [vmem:[%s3] sm:$0xf]
  %v153 = vld [vmem:[%s3 + $0x4] sm:$0xf]
  %v154 = vld [vmem:[%s3 + $0x8] sm:$0xf]
  %v155 = vld [vmem:[%s3 + $0xc] sm:$0xf]
  %v156 = vld [vmem:[%s3 + $0x10] sm:$0xf]
  %v157 = vld [vmem:[%s3 + $0x14] sm:$0xf]
  %v158 = vld [vmem:[%s3 + $0x18] sm:$0xf]
  %v159 = vld [vmem:[%s3 + $0x1c] sm:$0xf]
  %v160 = vld [vmem:[%s3 + $0x20] sm:$0xf]
  %v161 = vld [vmem:[%s3 + $0x24] sm:$0xf]
  %v162 = vld [vmem:[%s3 + $0x28] sm:$0xf]
  %v163 = vld [vmem:[%s3 + $0x2c] sm:$0xf]
  %v164 = vld [vmem:[%s3 + $0x30] sm:$0xf]
  %v165 = vld [vmem:[%s3 + $0x34] sm:$0xf]
  %v166 = vld [vmem:[%s3 + $0x38] sm:$0xf]
  %v167 = vld [vmem:[%s3 + $0x3c] sm:$0xf]
  %v168 = vld [vmem:[%s4] sm:$0x1]
  %v170 = vlaneseq
  %v171 = vshrl.u32 %v170, 7
  %v172 = vsub.s32 0, %v171
  %v173 = vrot.slane %v168, %v172
  %v191 = vunpack.c.l.b16 %v152
  %v192 = vunpack.c.l.b16 %v153
  %v193 = vunpack.c.l.b16 %v154
  %v194 = vunpack.c.l.b16 %v155
  %v195 = vunpack.c.l.b16 %v156
  %v196 = vunpack.c.l.b16 %v157
  %v197 = vunpack.c.l.b16 %v158
  %v198 = vunpack.c.l.b16 %v159
  %v199 = vunpack.c.l.b16 %v160
  %v200 = vunpack.c.l.b16 %v161
  %v201 = vunpack.c.l.b16 %v162
  %v202 = vunpack.c.l.b16 %v163
  %v203 = vunpack.c.l.b16 %v164
  %v204 = vunpack.c.l.b16 %v165
  %v205 = vunpack.c.l.b16 %v166
  %v206 = vunpack.c.l.b16 %v167
  %v207 = vpack.c.b16 %v192, %v191
  %v208 = vpack.c.b16 %v194, %v193
  %v209 = vpack.c.b16 %v196, %v195
  %v210 = vpack.c.b16 %v198, %v197
  %v211 = vpack.c.b16 %v200, %v199
  %v212 = vpack.c.b16 %v202, %v201
  %v213 = vpack.c.b16 %v204, %v203
  %v214 = vpack.c.b16 %v206, %v205
  %223 = vmatprep.subr.bf16.mxu0 0
  %224 = vmatpush1.bf16.msra.mxu0 %v207
  %225 = vmatprep.subr.bf16.mxu0 0
  %226 = vmatpush1.bf16.msra.mxu0 %v208
  %227 = vmatprep.subr.bf16.mxu0 0
  %228 = vmatpush1.bf16.msra.mxu0 %v209
  %229 = vmatprep.subr.bf16.mxu0 0
  %230 = vmatpush1.bf16.msra.mxu0 %v210
  %231 = vmatprep.subr.bf16.mxu0 0
  %232 = vmatpush1.bf16.msra.mxu0 %v211
  %233 = vmatprep.subr.bf16.mxu0 0
  %234 = vmatpush1.bf16.msra.mxu0 %v212
  %235 = vmatprep.subr.bf16.mxu0 0
  %236 = vmatpush1.bf16.msra.mxu0 %v213
  %237 = vmatprep.subr.bf16.mxu0 0
  %238 = vmatpush1.bf16.msra.mxu0 %v214
  %239 = vmatprep.subr.bf16.mxu0 0
  %240 = vmatpush1.bf16.msra.mxu0 0
  %241 = vmatprep.subr.bf16.mxu0 0
  %242 = vmatpush1.bf16.msra.mxu0 0
  %243 = vmatprep.subr.bf16.mxu0 0
  %244 = vmatpush1.bf16.msra.mxu0 0
  %245 = vmatprep.subr.bf16.mxu0 0
  %246 = vmatpush1.bf16.msra.mxu0 0
  %247 = vmatprep.subr.bf16.mxu0 0
  %248 = vmatpush1.bf16.msra.mxu0 0
  %249 = vmatprep.subr.bf16.mxu0 0
  %250 = vmatpush1.bf16.msra.mxu0 0
  %251 = vmatprep.subr.bf16.mxu0 0
  %252 = vmatpush1.bf16.msra.mxu0 0
  %253 = vmatprep.subr.bf16.mxu0 0
  %254 = vmatpush1.bf16.msra.mxu0 0
  %255 = vmatprep.mubr.bf16.mxu0 0
  %256 = vmatmul.mubr.bf16.gmra.mrb[0].mxu0 %v148
  %v257 = vpop.f32.mrb[0].mxu0
  %v258 = vadd.f32 %v173, %v257
  %v259 = vpop.f32.mrb[0].mxu0
  %v260 = vpop.f32.mrb[0].mxu0
  %v261 = vadd.f32 %v173, %v260
  %v262 = vpop.f32.mrb[0].mxu0
  %263 = vmatprep.mubr.bf16.mxu0 0
  %264 = vmatmul.mubr.bf16.gmra.mrb[0].mxu0 %v149
  %v265 = vpop.f32.mrb[0].mxu0
  %v266 = vadd.f32 %v173, %v265
  %v267 = vpop.f32.mrb[0].mxu0
  %v268 = vpop.f32.mrb[0].mxu0
  %v269 = vadd.f32 %v173, %v268
  %v270 = vpop.f32.mrb[0].mxu0
  %271 = vmatprep.mubr.bf16.mxu0 0
  %272 = vmatmul.mubr.bf16.gmra.mrb[0].mxu0 %v150
  %v273 = vpop.f32.mrb[0].mxu0
  %v274 = vadd.f32 %v173, %v273
  %v275 = vpop.f32.mrb[0].mxu0
  %v276 = vpop.f32.mrb[0].mxu0
  %v277 = vadd.f32 %v173, %v276
  %v278 = vpop.f32.mrb[0].mxu0
  %279 = vmatprep.mubr.bf16.mxu0 0
  %280 = vmatmul.mubr.bf16.gmra.mrb[0].mxu0 %v151
  %v281 = vpop.f32.mrb[0].mxu0
  %v282 = vadd.f32 %v173, %v281
  %v283 = vpop.f32.mrb[0].mxu0
  %v284 = vpop.f32.mrb[0].mxu0
  %v285 = vadd.f32 %v173, %v284
  %v286 = vpop.f32.mrb[0].mxu0
  %287 = vdwg.mxu0
  %v288 = vmax.f32 %v258, 0.0
  %v289 = vmax.f32 %v261, 0.0
  %v290 = vmax.f32 %v266, 0.0
  %v291 = vmax.f32 %v269, 0.0
  %v292 = vmax.f32 %v274, 0.0
  %v293 = vmax.f32 %v277, 0.0
  %v294 = vmax.f32 %v282, 0.0
  %v295 = vmax.f32 %v285, 0.0
  %v296 = vpack.c.bf16 %v289, %v288
  %v297 = vpack.c.bf16 %v291, %v290
  %v298 = vpack.c.bf16 %v293, %v292
  %v299 = vpack.c.bf16 %v295, %v294
  %v300 = vld [vmem:[%s5] sm:$0xf]
  %v301 = vld [vmem:[%s5 + $0x4] sm:$0xf]
  %v302 = vld [vmem:[%s5 + $0x8] sm:$0xf]
  %v303 = vld [vmem:[%s5 + $0xc] sm:$0xf]
  %v304 = vld [vmem:[%s5 + $0x10] sm:$0xf]
  %v305 = vld [vmem:[%s5 + $0x14] sm:$0xf]
  %v306 = vld [vmem:[%s5 + $0x18] sm:$0xf]
  %v307 = vld [vmem:[%s5 + $0x1c] sm:$0xf]
  %v308 = vld [vmem:[%s6] sm:$0x1]
  %v310 = vlaneseq
  %v311 = vshrl.u32 %v310, 7
  %v312 = vsub.s32 0, %v311
  %v313 = vrot.slane %v308, %v312
  %v323 = vunpack.c.l.b16 %v300
  %v324 = vunpack.c.l.b16 %v301
  %v325 = vunpack.c.l.b16 %v302
  %v326 = vunpack.c.l.b16 %v303
  %v327 = vunpack.c.l.b16 %v304
  %v328 = vunpack.c.l.b16 %v305
  %v329 = vunpack.c.l.b16 %v306
  %v330 = vunpack.c.l.b16 %v307
  %v331 = vpack.c.b16 %v324, %v323
  %v332 = vpack.c.b16 %v326, %v325
  %v333 = vpack.c.b16 %v328, %v327
  %v334 = vpack.c.b16 %v330, %v329
  %vm339 = vcmask 523264
  %v341 = vsel %vm339, %v296, 0
  %v344 = vsel %vm339, %v297, 0
  %v347 = vsel %vm339, %v298, 0
  %v350 = vsel %vm339, %v299, 0
  %352 = vmatprep.subr.bf16.mxu0 0
  %353 = vmatpush1.bf16.msra.mxu0 %v331
  %354 = vmatprep.subr.bf16.mxu0 0
  %355 = vmatpush1.bf16.msra.mxu0 %v332
  %356 = vmatprep.subr.bf16.mxu0 0
  %357 = vmatpush1.bf16.msra.mxu0 %v333
  %358 = vmatprep.subr.bf16.mxu0 0
  %359 = vmatpush1.bf16.msra.mxu0 %v334
  %360 = vmatprep.subr.bf16.mxu0 0
  %361 = vmatpush1.bf16.msra.mxu0 0
  %362 = vmatprep.subr.bf16.mxu0 0
  %363 = vmatpush1.bf16.msra.mxu0 0
  %364 = vmatprep.subr.bf16.mxu0 0
  %365 = vmatpush1.bf16.msra.mxu0 0
  %366 = vmatprep.subr.bf16.mxu0 0
  %367 = vmatpush1.bf16.msra.mxu0 0
  %368 = vmatprep.subr.bf16.mxu0 0
  %369 = vmatpush1.bf16.msra.mxu0 0
  %370 = vmatprep.subr.bf16.mxu0 0
  %371 = vmatpush1.bf16.msra.mxu0 0
  %372 = vmatprep.subr.bf16.mxu0 0
  %373 = vmatpush1.bf16.msra.mxu0 0
  %374 = vmatprep.subr.bf16.mxu0 0
  %375 = vmatpush1.bf16.msra.mxu0 0
  %376 = vmatprep.subr.bf16.mxu0 0
  %377 = vmatpush1.bf16.msra.mxu0 0
  %378 = vmatprep.subr.bf16.mxu0 0
  %379 = vmatpush1.bf16.msra.mxu0 0
  %380 = vmatprep.subr.bf16.mxu0 0
  %381 = vmatpush1.bf16.msra.mxu0 0
  %382 = vmatprep.subr.bf16.mxu0 0
  %383 = vmatpush1.bf16.msra.mxu0 0
  %384 = vmatprep.mubr.bf16.mxu0 0
  %385 = vmatmul.mubr.bf16.gmra.mrb[0].mxu0 %v341
  %v386 = vpop.f32.mrb[0].mxu0
  %v387 = vadd.f32 %v313, %v386
  %v388 = vpop.f32.mrb[0].mxu0
  %v389 = vpop.f32.mrb[0].mxu0
  %v390 = vadd.f32 %v313, %v389
  %v391 = vpop.f32.mrb[0].mxu0
  %392 = vmatprep.mubr.bf16.mxu0 0
  %393 = vmatmul.mubr.bf16.gmra.mrb[0].mxu0 %v344
  %v394 = vpop.f32.mrb[0].mxu0
  %v395 = vadd.f32 %v313, %v394
  %v396 = vpop.f32.mrb[0].mxu0
  %v397 = vpop.f32.mrb[0].mxu0
  %v398 = vadd.f32 %v313, %v397
  %v399 = vpop.f32.mrb[0].mxu0
  %400 = vmatprep.mubr.bf16.mxu0 0
  %401 = vmatmul.mubr.bf16.gmra.mrb[0].mxu0 %v347
  %v402 = vpop.f32.mrb[0].mxu0
  %v403 = vadd.f32 %v313, %v402
  %v404 = vpop.f32.mrb[0].mxu0
  %v405 = vpop.f32.mrb[0].mxu0
  %v406 = vadd.f32 %v313, %v405
  %v407 = vpop.f32.mrb[0].mxu0
  %408 = vmatprep.mubr.bf16.mxu0 0
  %409 = vmatmul.mubr.bf16.gmra.mrb[0].mxu0 %v350
  %v410 = vpop.f32.mrb[0].mxu0
  %v411 = vadd.f32 %v313, %v410
  %v412 = vpop.f32.mrb[0].mxu0
  %v413 = vpop.f32.mrb[0].mxu0
  %v414 = vadd.f32 %v313, %v413
  %v415 = vpop.f32.mrb[0].mxu0
  %416 = vdwg.mxu0
  %v417 = vtanh.pop %v387
  %v418 = vtanh.pop %v390
  %v419 = vtanh.pop %v395
  %v420 = vtanh.pop %v398
  %v421 = vtanh.pop %v403
  %v422 = vtanh.pop %v406
  %v423 = vtanh.pop %v411
  %v424 = vtanh.pop %v414
  %vm425 = vcmask 31744
  %426 = vst.msk [vmem:[%s7] sm:$0xff] %vm425, %v417
  %427 = vst.msk [vmem:[%s7 + $0x8] sm:$0xff] %vm425, %v418
  %428 = vst.msk [vmem:[%s7 + $0x10] sm:$0xff] %vm425, %v419
  %429 = vst.msk [vmem:[%s7 + $0x18] sm:$0xff] %vm425, %v420
  %430 = vst.msk [vmem:[%s7 + $0x20] sm:$0xff] %vm425, %v421
  %431 = vst.msk [vmem:[%s7 + $0x28] sm:$0xff] %vm425, %v422
  %432 = vst.msk [vmem:[%s7 + $0x30] sm:$0xff] %vm425, %v423
  %433 = vst.msk [vmem:[%s7 + $0x38] sm:$0xff] %vm425, %v424
  // Predicated region
  $region30: #{tpu_custom_call.1} parent=0 // pred_check
    _
  $region31: #{tpu_custom_call.1} parent=0 // pred_check_branch
    %435 = sbr.rel (0) target = $region33
  $region32: #{tpu_custom_call.1} parent=0 // pred_region
    _
  $region33: #{tpu_custom_call.1} parent=0 // pred_fallthru
    _
  // Predicated region
  $region34: #{tpu_custom_call.1} parent=0 // pred_check
    _
  $region35: #{tpu_custom_call.1} parent=0 // pred_check_branch
    %437 = sbr.rel (0) target = $region37
  $region36: #{tpu_custom_call.1} parent=0 // pred_region
    _
  $region37: #{tpu_custom_call.1} parent=0 // pred_fallthru
    _

</llo_original>
